<compile_context>
chip_gen: v5e
topology: v5e:2x2
jax: 0.10.0
libtpu: 0.0.40
codegen_flags: <defaults>
</compile_context>

<pallas_src>
from functools import partial

import jax
import jax.numpy as jnp
from jax.experimental import pallas as pl
from jax.experimental.pallas import tpu as pltpu


def lstm_classifier_kernel(x_ref, normp_ref, wconv_ref, bconv_ref,
                           wih_ref, bgate_ref, whh_ref, linw_ref, linb_ref,
                           out_ref, *, hidden_size, n_steps):
    H = hidden_size
    H4 = 4 * H
    TB = x_ref.shape[0]                            # batch tile (multiple of 8)

    # ---- F.normalize(input): L2 over the L axis (eps=1e-12) ----------------
    # x is laid out (TB, C*L [padded to 128]); normp is block-diagonal ones so
    # that (x*x) @ normp gives, at every column (c*L + l), the per-(b, c) sum
    # of squares over L.  rsqrt(max(., eps^2)) == 1 / max(||x||, eps).
    x = x_ref[...]                                               # (TB, CLp)
    sumsq = jnp.dot(x * x, normp_ref[...],
                    preferred_element_type=jnp.float32)
    xn = x * jax.lax.rsqrt(jnp.maximum(sumsq, 1e-24))

    # ---- Conv1d(k=10, s=3) + bias + ReLU for ALL positions: ONE matmul -----
    # (the im2col / window selection is baked into wconv in glue)
    conv_all = (jnp.dot(xn, wconv_ref[...], preferred_element_type=jnp.float32)
                + bconv_ref[...])                                # (TB, T*64)
    relu_all = jnp.maximum(conv_all, 0.0)

    # ---- Hoisted input-gate projection for all timesteps: ONE matmul -------
    # wih is block-diagonal kron(I_T, W_ih^T); b_ih + b_hh folded into bgate.
    gx_all = (jnp.dot(relu_all, wih_ref[...],
                      preferred_element_type=jnp.float32)
              + bgate_ref[...])                                  # (TB, T*4H)

    whh = whh_ref[...]                                           # (H, 4H)

    # ---- LSTMCell recurrence (PyTorch gate order i, f, g, o) ----------------
    h = jnp.zeros((TB, H), jnp.float32)
    c = jnp.zeros((TB, H), jnp.float32)
    for t in range(n_steps):                       # tiny, static: full unroll
        gates = gx_all[:, t * H4:(t + 1) * H4] + jnp.dot(
            h, whh, preferred_element_type=jnp.float32)          # (TB, 4H)
        sig = jax.nn.sigmoid(gates)          # one full-width EUP pass (i,f,o)
        i_g = sig[:, 0 * H:1 * H]
        f_g = sig[:, 1 * H:2 * H]
        o_g = sig[:, 3 * H:4 * H]
        g_g = jnp.tanh(gates[:, 2 * H:3 * H])
        c = f_g * c + i_g * g_g
        h = o_g * jnp.tanh(c)

    # ---- Final Linear(hidden, output) — output padded to 128 lanes ---------
    out_ref[...] = (jnp.dot(h, linw_ref[...], preferred_element_type=jnp.float32)
                    + linb_ref[...])


def lstm_classifier_forward(x, kparams, *, hidden_size, output_size,
                            kernel_size=10, stride=3, batch_tile=8):
    """x: (B, L, C_in) float32. Returns decoded logits (B, output_size)."""
    B, L, C = x.shape
    T = (L - kernel_size) // stride + 1
    H = hidden_size
    CL_pad = kparams["norm_p"].shape[0]            # C*L padded to 128 lanes
    O_pad = kparams["lin_b"].shape[-1]             # output padded to 128 lanes

    TB = batch_tile                                # multiple of 8 (f32 sublane)
    B_pad = pl.cdiv(B, TB) * TB

    # Layout plumbing only (no compute hoisted): (B, L, C) -> (B_pad, CL_pad),
    # channel-major columns, batch padded to a full sublane tile, lanes to 128.
    x2d = jnp.transpose(x, (0, 2, 1)).reshape(B, C * L)
    x2d = jnp.pad(x2d, ((0, B_pad - B), (0, CL_pad - C * L)))

    kern = partial(lstm_classifier_kernel, hidden_size=H, n_steps=T)

    def full(a):  # whole-array (un-tiled) operand
        return pl.BlockSpec(a.shape, lambda b: (0, 0))

    out = pl.pallas_call(
        kern,
        grid=(B_pad // TB,),
        in_specs=[pl.BlockSpec((TB, CL_pad), lambda b: (b, 0)),
                  full(kparams["norm_p"]),
                  full(kparams["w_conv"]),
                  full(kparams["b_conv"]),
                  full(kparams["w_ih"]),
                  full(kparams["b_gates"]),
                  full(kparams["w_hh"]),
                  full(kparams["lin_w"]),
                  full(kparams["lin_b"])],
        out_specs=pl.BlockSpec((TB, O_pad), lambda b: (b, 0)),
        out_shape=jax.ShapeDtypeStruct((B_pad, O_pad), jnp.float32),
        compiler_params=pltpu.CompilerParams(
            dimension_semantics=("parallel",)),    # batch tiles -> both TCs on v7x
    )(x2d, kparams["norm_p"], kparams["w_conv"], kparams["b_conv"],
      kparams["w_ih"], kparams["b_gates"], kparams["w_hh"],
      kparams["lin_w"], kparams["lin_b"])

    return out[:B, :output_size]


def init_params(key, *, input_size, hidden_size, output_size, kernel_size=10):
    """Deterministic synthetic params in the PyTorch module's native shapes."""
    ks = jax.random.split(key, 8)
    H, C, K, O = hidden_size, input_size, kernel_size, output_size

    def u(k, shape, bound):
        return jax.random.uniform(k, shape, jnp.float32, -bound, bound)

    conv_bound = 1.0 / float(jnp.sqrt(C * K))
    lstm_bound = 1.0 / float(jnp.sqrt(H))
    lin_bound = 1.0 / float(jnp.sqrt(H))

    return dict(
        conv_w=u(ks[0], (64, C, K), conv_bound),     # (out_ch, in_ch, K)
        conv_b=u(ks[1], (64,), conv_bound),
        w_ih=u(ks[2], (4 * H, 64), lstm_bound),      # LSTMCell weight_ih
        b_ih=u(ks[3], (4 * H,), lstm_bound),
        w_hh=u(ks[4], (4 * H, H), lstm_bound),       # LSTMCell weight_hh
        b_hh=u(ks[5], (4 * H,), lstm_bound),
        lin_w=u(ks[6], (O, H), lin_bound),
        lin_b=u(ks[7], (O,), lin_bound),
    )


def prepare_kernel_params(params, *, input_size, seq_len,
                          kernel_size=10, stride=3, lane=128):
    """Glue: fold im2col / transposes / biases / padding into kernel operands."""
    C, L, K, S = input_size, seq_len, kernel_size, stride
    conv_w = params["conv_w"]                       # (OC, C, K)
    OC = conv_w.shape[0]
    T = (L - K) // S + 1
    H4 = params["w_ih"].shape[0]
    O = params["lin_w"].shape[0]

    CL = C * L
    CL_pad = pl.cdiv(CL, lane) * lane               # lane-dense input columns
    O_pad = pl.cdiv(O, lane) * lane                 # lane-dense output columns

    # Block-diagonal ones: per-(b, c) L2 reduce + broadcast via one matmul.
    norm_p = jnp.kron(jnp.eye(C, dtype=jnp.float32),
                      jnp.ones((L, L), jnp.float32))              # (C*L, C*L)
    norm_p = jnp.pad(norm_p, ((0, CL_pad - CL), (0, CL_pad - CL)))

    # Conv as a single matmul: w_conv[c*L + l, t*OC + o] = W[o, c, l - t*S].
    wbig = jnp.zeros((C, L, T, OC), jnp.float32)
    for t in range(T):
        for k in range(K):
            wbig = wbig.at[:, t * S + k, t, :].set(conv_w[:, :, k].T)
    w_conv = jnp.pad(wbig.reshape(CL, T * OC), ((0, CL_pad - CL), (0, 0)))
    b_conv = jnp.tile(params["conv_b"].reshape(1, OC), (1, T))    # (1, T*OC)

    # Block-diagonal hoisted input-gate weight and folded, tiled gate bias.
    w_ih_blk = jnp.kron(jnp.eye(T, dtype=jnp.float32),
                        params["w_ih"].T)                         # (T*OC, T*4H)
    b_gates = jnp.tile((params["b_ih"] + params["b_hh"]).reshape(1, H4),
                       (1, T))                                    # (1, T*4H)

    lin_w = jnp.pad(params["lin_w"].T, ((0, 0), (0, O_pad - O)))  # (H, O_pad)
    lin_b = jnp.pad(params["lin_b"].reshape(1, -1),
                    ((0, 0), (0, O_pad - O)))                     # (1, O_pad)

    return dict(
        norm_p=norm_p,
        w_conv=w_conv,
        b_conv=b_conv,
        w_ih=w_ih_blk,
        b_gates=b_gates,
        w_hh=params["w_hh"].T,                                    # (H, 4H)
        lin_w=lin_w,
        lin_b=lin_b,
    )


def reference_forward(x, p, *, hidden_size, kernel_size=10, stride=3):
    """Pure-JAX reference with PyTorch-faithful math (correctness check)."""
    norm = jnp.sqrt(jnp.sum(x * x, axis=1, keepdims=True))
    xn = x / jnp.maximum(norm, 1e-12)
    B, L, _ = x.shape
    H = hidden_size
    T = (L - kernel_size) // stride + 1
    h = jnp.zeros((B, H), jnp.float32)
    c = jnp.zeros((B, H), jnp.float32)
    for t in range(T):
        window = xn[:, t * stride:t * stride + kernel_size, :]    # (B, K, C)
        conv_t = jnp.einsum("bkc,ock->bo", window, p["conv_w"]) + p["conv_b"]
        xt = jnp.maximum(conv_t, 0.0)
        gates = xt @ p["w_ih"].T + p["b_ih"] + h @ p["w_hh"].T + p["b_hh"]
        i_g = jax.nn.sigmoid(gates[:, :H])
        f_g = jax.nn.sigmoid(gates[:, H:2 * H])
        g_g = jnp.tanh(gates[:, 2 * H:3 * H])
        o_g = jax.nn.sigmoid(gates[:, 3 * H:])
        c = f_g * c + i_g * g_g
        h = o_g * jnp.tanh(c)
    return h @ p["lin_w"].T + p["lin_b"]


if __name__ == "__main__":
    # Small shapes consistent with the module's forward:
    #   batch=2, seq_len=16, input_size=4, hidden_size=32, output_size=8
    #   conv(kernel=10, stride=3) -> n_steps = (16-10)//3 + 1 = 3
    B, L, C_IN = 2, 16, 4
    HIDDEN, OUT = 32, 8

    key = jax.random.PRNGKey(0)
    k_x, k_p = jax.random.split(key)
    x = jax.random.normal(k_x, (B, L, C_IN), jnp.float32)

    params = init_params(k_p, input_size=C_IN, hidden_size=HIDDEN,
                         output_size=OUT)
    kparams = prepare_kernel_params(params, input_size=C_IN, seq_len=L)

    decoded = lstm_classifier_forward(x, kparams, hidden_size=HIDDEN,
                                      output_size=OUT)
    decoded = jax.block_until_ready(decoded)

    ref = reference_forward(x, params, hidden_size=HIDDEN)
    assert decoded.shape == (B, OUT)
    assert jnp.allclose(decoded, ref, atol=1e-5, rtol=1e-4), (
        f"max abs diff {jnp.max(jnp.abs(decoded - ref))}")

    print("KERNEL_OK")
</pallas_src>

<mosaic_0001>
module attributes {stable_mosaic.version = 11 : i64} {
  func.func @lstm_classifier_kernel(%arg0: i32, %arg1: memref<8x128xf32, #tpu.memory_space<vmem>>, %arg2: memref<128x128xf32, #tpu.memory_space<vmem>>, %arg3: memref<128x192xf32, #tpu.memory_space<vmem>>, %arg4: memref<1x192xf32, #tpu.memory_space<vmem>>, %arg5: memref<192x384xf32, #tpu.memory_space<vmem>>, %arg6: memref<1x384xf32, #tpu.memory_space<vmem>>, %arg7: memref<32x128xf32, #tpu.memory_space<vmem>>, %arg8: memref<32x128xf32, #tpu.memory_space<vmem>>, %arg9: memref<1x128xf32, #tpu.memory_space<vmem>>, %arg10: memref<8x128xf32, #tpu.memory_space<vmem>>) attributes {dimension_semantics = [#tpu.dimension_semantics<parallel>], iteration_bounds = array<i64: 1>, scalar_prefetch = 0 : i64, scratch_operands = 0 : i64, tpu.core_type = #tpu.core_type<tc>, window_params = [{transform_indices = @transform_0, window_bounds = array<i64: 8, 128>}, {pipeline_mode = #tpu.pipeline_mode<synchronous>, transform_indices = @transform_1, window_bounds = array<i64: 128, 128>}, {pipeline_mode = #tpu.pipeline_mode<synchronous>, transform_indices = @transform_2, window_bounds = array<i64: 128, 192>}, {pipeline_mode = #tpu.pipeline_mode<synchronous>, transform_indices = @transform_3, window_bounds = array<i64: 1, 192>}, {pipeline_mode = #tpu.pipeline_mode<synchronous>, transform_indices = @transform_4, window_bounds = array<i64: 192, 384>}, {pipeline_mode = #tpu.pipeline_mode<synchronous>, transform_indices = @transform_5, window_bounds = array<i64: 1, 384>}, {pipeline_mode = #tpu.pipeline_mode<synchronous>, transform_indices = @transform_6, window_bounds = array<i64: 32, 128>}, {pipeline_mode = #tpu.pipeline_mode<synchronous>, transform_indices = @transform_7, window_bounds = array<i64: 32, 128>}, {pipeline_mode = #tpu.pipeline_mode<synchronous>, transform_indices = @transform_8, window_bounds = array<i64: 1, 128>}, {transform_indices = @transform_9, window_bounds = array<i64: 8, 128>}]} {
    %c0 = arith.constant 0 : index
    %c0_0 = arith.constant 0 : index
    %0 = vector.load %arg1[%c0, %c0_0] : memref<8x128xf32, #tpu.memory_space<vmem>>, vector<8x128xf32>
    %1 = arith.mulf %0, %0 : vector<8x128xf32>
    %c0_1 = arith.constant 0 : index
    %c0_2 = arith.constant 0 : index
    %2 = vector.load %arg2[%c0_1, %c0_2] : memref<128x128xf32, #tpu.memory_space<vmem>>, vector<128x128xf32>
    %cst = arith.constant dense<0.000000e+00> : vector<8x128xf32>
    %3 = tpu.matmul %1, %2, %cst {dimension_numbers = #tpu.dot_dimension_numbers<[1], [0], [0], [1], [0, 0, 1, 1], [], []>} : vector<8x128xf32>, vector<128x128xf32>, vector<8x128xf32> -> vector<8x128xf32>
    %cst_3 = arith.constant 1.000000e-24 : f32
    %4 = vector.broadcast %cst_3 : f32 to vector<8x128xf32>
    %5 = arith.maximumf %3, %4 : vector<8x128xf32>
    %6 = math.rsqrt %5 : vector<8x128xf32>
    %7 = arith.mulf %0, %6 : vector<8x128xf32>
    %c0_4 = arith.constant 0 : index
    %c0_5 = arith.constant 0 : index
    %8 = vector.load %arg3[%c0_4, %c0_5] : memref<128x192xf32, #tpu.memory_space<vmem>>, vector<128x192xf32>
    %cst_6 = arith.constant dense<0.000000e+00> : vector<8x192xf32>
    %9 = tpu.matmul %7, %8, %cst_6 {dimension_numbers = #tpu.dot_dimension_numbers<[1], [0], [0], [1], [0, 0, 1, 1], [], []>} : vector<8x128xf32>, vector<128x192xf32>, vector<8x192xf32> -> vector<8x192xf32>
    %c0_7 = arith.constant 0 : index
    %c0_8 = arith.constant 0 : index
    %10 = vector.load %arg4[%c0_7, %c0_8] : memref<1x192xf32, #tpu.memory_space<vmem>>, vector<1x192xf32>
    %11 = vector.broadcast %10 : vector<1x192xf32> to vector<8x192xf32>
    %12 = arith.addf %9, %11 : vector<8x192xf32>
    %cst_9 = arith.constant 0.000000e+00 : f32
    %13 = vector.broadcast %cst_9 : f32 to vector<8x192xf32>
    %14 = arith.maximumf %12, %13 : vector<8x192xf32>
    %c0_10 = arith.constant 0 : index
    %c0_11 = arith.constant 0 : index
    %15 = vector.load %arg5[%c0_10, %c0_11] : memref<192x384xf32, #tpu.memory_space<vmem>>, vector<192x384xf32>
    %cst_12 = arith.constant dense<0.000000e+00> : vector<8x384xf32>
    %16 = tpu.matmul %14, %15, %cst_12 {dimension_numbers = #tpu.dot_dimension_numbers<[1], [0], [0], [1], [0, 0, 1, 1], [], []>} : vector<8x192xf32>, vector<192x384xf32>, vector<8x384xf32> -> vector<8x384xf32>
    %c0_13 = arith.constant 0 : index
    %c0_14 = arith.constant 0 : index
    %17 = vector.load %arg6[%c0_13, %c0_14] : memref<1x384xf32, #tpu.memory_space<vmem>>, vector<1x384xf32>
    %18 = vector.broadcast %17 : vector<1x384xf32> to vector<8x384xf32>
    %19 = arith.addf %16, %18 : vector<8x384xf32>
    %c0_15 = arith.constant 0 : index
    %c0_16 = arith.constant 0 : index
    %20 = vector.load %arg7[%c0_15, %c0_16] : memref<32x128xf32, #tpu.memory_space<vmem>>, vector<32x128xf32>
    %cst_17 = arith.constant 0.000000e+00 : f32
    %21 = vector.broadcast %cst_17 : f32 to vector<8x32xf32>
    %cst_18 = arith.constant 0.000000e+00 : f32
    %22 = vector.broadcast %cst_18 : f32 to vector<8x32xf32>
    %23 = vector.extract_strided_slice %19 {offsets = [0, 0], sizes = [8, 128], strides = [1, 1]} : vector<8x384xf32> to vector<8x128xf32>
    %cst_19 = arith.constant dense<0.000000e+00> : vector<8x128xf32>
    %24 = tpu.matmul %21, %20, %cst_19 {dimension_numbers = #tpu.dot_dimension_numbers<[1], [0], [0], [1], [0, 0, 1, 1], [], []>} : vector<8x32xf32>, vector<32x128xf32>, vector<8x128xf32> -> vector<8x128xf32>
    %25 = arith.addf %23, %24 : vector<8x128xf32>
    %26 = arith.negf %25 : vector<8x128xf32>
    %27 = math.exp %26 : vector<8x128xf32>
    %cst_20 = arith.constant 1.000000e+00 : f32
    %28 = vector.broadcast %cst_20 : f32 to vector<8x128xf32>
    %29 = arith.addf %28, %27 : vector<8x128xf32>
    %30 = arith.divf %28, %29 : vector<8x128xf32>
    %31 = vector.extract_strided_slice %30 {offsets = [0, 0], sizes = [8, 32], strides = [1, 1]} : vector<8x128xf32> to vector<8x32xf32>
    %32 = vector.extract_strided_slice %30 {offsets = [0, 32], sizes = [8, 32], strides = [1, 1]} : vector<8x128xf32> to vector<8x32xf32>
    %33 = vector.extract_strided_slice %30 {offsets = [0, 96], sizes = [8, 32], strides = [1, 1]} : vector<8x128xf32> to vector<8x32xf32>
    %34 = vector.extract_strided_slice %25 {offsets = [0, 64], sizes = [8, 32], strides = [1, 1]} : vector<8x128xf32> to vector<8x32xf32>
    %35 = math.tanh %34 : vector<8x32xf32>
    %36 = arith.mulf %32, %22 : vector<8x32xf32>
    %37 = arith.mulf %31, %35 : vector<8x32xf32>
    %38 = arith.addf %36, %37 : vector<8x32xf32>
    %39 = math.tanh %38 : vector<8x32xf32>
    %40 = arith.mulf %33, %39 : vector<8x32xf32>
    %41 = vector.extract_strided_slice %19 {offsets = [0, 128], sizes = [8, 128], strides = [1, 1]} : vector<8x384xf32> to vector<8x128xf32>
    %cst_21 = arith.constant dense<0.000000e+00> : vector<8x128xf32>
    %42 = tpu.matmul %40, %20, %cst_21 {dimension_numbers = #tpu.dot_dimension_numbers<[1], [0], [0], [1], [0, 0, 1, 1], [], []>} : vector<8x32xf32>, vector<32x128xf32>, vector<8x128xf32> -> vector<8x128xf32>
    %43 = arith.addf %41, %42 : vector<8x128xf32>
    %44 = arith.negf %43 : vector<8x128xf32>
    %45 = math.exp %44 : vector<8x128xf32>
    %cst_22 = arith.constant 1.000000e+00 : f32
    %46 = vector.broadcast %cst_22 : f32 to vector<8x128xf32>
    %47 = arith.addf %46, %45 : vector<8x128xf32>
    %48 = arith.divf %46, %47 : vector<8x128xf32>
    %49 = vector.extract_strided_slice %48 {offsets = [0, 0], sizes = [8, 32], strides = [1, 1]} : vector<8x128xf32> to vector<8x32xf32>
    %50 = vector.extract_strided_slice %48 {offsets = [0, 32], sizes = [8, 32], strides = [1, 1]} : vector<8x128xf32> to vector<8x32xf32>
    %51 = vector.extract_strided_slice %48 {offsets = [0, 96], sizes = [8, 32], strides = [1, 1]} : vector<8x128xf32> to vector<8x32xf32>
    %52 = vector.extract_strided_slice %43 {offsets = [0, 64], sizes = [8, 32], strides = [1, 1]} : vector<8x128xf32> to vector<8x32xf32>
    %53 = math.tanh %52 : vector<8x32xf32>
    %54 = arith.mulf %50, %38 : vector<8x32xf32>
    %55 = arith.mulf %49, %53 : vector<8x32xf32>
    %56 = arith.addf %54, %55 : vector<8x32xf32>
    %57 = math.tanh %56 : vector<8x32xf32>
    %58 = arith.mulf %51, %57 : vector<8x32xf32>
    %59 = vector.extract_strided_slice %19 {offsets = [0, 256], sizes = [8, 128], strides = [1, 1]} : vector<8x384xf32> to vector<8x128xf32>
    %cst_23 = arith.constant dense<0.000000e+00> : vector<8x128xf32>
    %60 = tpu.matmul %58, %20, %cst_23 {dimension_numbers = #tpu.dot_dimension_numbers<[1], [0], [0], [1], [0, 0, 1, 1], [], []>} : vector<8x32xf32>, vector<32x128xf32>, vector<8x128xf32> -> vector<8x128xf32>
    %61 = arith.addf %59, %60 : vector<8x128xf32>
    %62 = arith.negf %61 : vector<8x128xf32>
    %63 = math.exp %62 : vector<8x128xf32>
    %cst_24 = arith.constant 1.000000e+00 : f32
    %64 = vector.broadcast %cst_24 : f32 to vector<8x128xf32>
    %65 = arith.addf %64, %63 : vector<8x128xf32>
    %66 = arith.divf %64, %65 : vector<8x128xf32>
    %67 = vector.extract_strided_slice %66 {offsets = [0, 0], sizes = [8, 32], strides = [1, 1]} : vector<8x128xf32> to vector<8x32xf32>
    %68 = vector.extract_strided_slice %66 {offsets = [0, 32], sizes = [8, 32], strides = [1, 1]} : vector<8x128xf32> to vector<8x32xf32>
    %69 = vector.extract_strided_slice %66 {offsets = [0, 96], sizes = [8, 32], strides = [1, 1]} : vector<8x128xf32> to vector<8x32xf32>
    %70 = vector.extract_strided_slice %61 {offsets = [0, 64], sizes = [8, 32], strides = [1, 1]} : vector<8x128xf32> to vector<8x32xf32>
    %71 = math.tanh %70 : vector<8x32xf32>
    %72 = arith.mulf %68, %56 : vector<8x32xf32>
    %73 = arith.mulf %67, %71 : vector<8x32xf32>
    %74 = arith.addf %72, %73 : vector<8x32xf32>
    %75 = math.tanh %74 : vector<8x32xf32>
    %76 = arith.mulf %69, %75 : vector<8x32xf32>
    %c0_25 = arith.constant 0 : index
    %c0_26 = arith.constant 0 : index
    %77 = vector.load %arg8[%c0_25, %c0_26] : memref<32x128xf32, #tpu.memory_space<vmem>>, vector<32x128xf32>
    %cst_27 = arith.constant dense<0.000000e+00> : vector<8x128xf32>
    %78 = tpu.matmul %76, %77, %cst_27 {dimension_numbers = #tpu.dot_dimension_numbers<[1], [0], [0], [1], [0, 0, 1, 1], [], []>} : vector<8x32xf32>, vector<32x128xf32>, vector<8x128xf32> -> vector<8x128xf32>
    %c0_28 = arith.constant 0 : index
    %c0_29 = arith.constant 0 : index
    %79 = vector.load %arg9[%c0_28, %c0_29] : memref<1x128xf32, #tpu.memory_space<vmem>>, vector<1x128xf32>
    %80 = vector.broadcast %79 : vector<1x128xf32> to vector<8x128xf32>
    %81 = arith.addf %78, %80 : vector<8x128xf32>
    %c0_30 = arith.constant 0 : index
    %c0_31 = arith.constant 0 : index
    %82 = vector.load %arg10[%c0_30, %c0_31] : memref<8x128xf32, #tpu.memory_space<vmem>>, vector<8x128xf32>
    tpu.vector_store %arg10[%c0_30, %c0_31], %81 {strides = array<i32>} : memref<8x128xf32, #tpu.memory_space<vmem>>, vector<8x128xf32>,
    return
  }
  func.func @transform_0(%arg0: i32) -> (i32, i32) {
    %c0_i32 = arith.constant 0 : i32
    %c0_i32_0 = arith.constant 0 : i32
    return %arg0, %c0_i32 : i32, i32
  }
  func.func @transform_1(%arg0: i32) -> (i32, i32) {
    %c0_i32 = arith.constant 0 : i32
    %c0_i32_0 = arith.constant 0 : i32
    %c0_i32_1 = arith.constant 0 : i32
    return %c0_i32, %c0_i32_0 : i32, i32
  }
  func.func @transform_2(%arg0: i32) -> (i32, i32) {
    %c0_i32 = arith.constant 0 : i32
    %c0_i32_0 = arith.constant 0 : i32
    %c0_i32_1 = arith.constant 0 : i32
    return %c0_i32, %c0_i32_0 : i32, i32
  }
  func.func @transform_3(%arg0: i32) -> (i32, i32) {
    %c0_i32 = arith.constant 0 : i32
    %c0_i32_0 = arith.constant 0 : i32
    %c0_i32_1 = arith.constant 0 : i32
    return %c0_i32, %c0_i32_0 : i32, i32
  }
  func.func @transform_4(%arg0: i32) -> (i32, i32) {
    %c0_i32 = arith.constant 0 : i32
    %c0_i32_0 = arith.constant 0 : i32
    %c0_i32_1 = arith.constant 0 : i32
    return %c0_i32, %c0_i32_0 : i32, i32
  }
  func.func @transform_5(%arg0: i32) -> (i32, i32) {
    %c0_i32 = arith.constant 0 : i32
    %c0_i32_0 = arith.constant 0 : i32
    %c0_i32_1 = arith.constant 0 : i32
    return %c0_i32, %c0_i32_0 : i32, i32
  }
  func.func @transform_6(%arg0: i32) -> (i32, i32) {
    %c0_i32 = arith.constant 0 : i32
    %c0_i32_0 = arith.constant 0 : i32
    %c0_i32_1 = arith.constant 0 : i32
    return %c0_i32, %c0_i32_0 : i32, i32
  }
  func.func @transform_7(%arg0: i32) -> (i32, i32) {
    %c0_i32 = arith.constant 0 : i32
    %c0_i32_0 = arith.constant 0 : i32
    %c0_i32_1 = arith.constant 0 : i32
    return %c0_i32, %c0_i32_0 : i32, i32
  }
  func.func @transform_8(%arg0: i32) -> (i32, i32) {
    %c0_i32 = arith.constant 0 : i32
    %c0_i32_0 = arith.constant 0 : i32
    %c0_i32_1 = arith.constant 0 : i32
    return %c0_i32, %c0_i32_0 : i32, i32
  }
  func.func @transform_9(%arg0: i32) -> (i32, i32) {
    %c0_i32 = arith.constant 0 : i32
    %c0_i32_0 = arith.constant 0 : i32
    return %arg0, %c0_i32 : i32, i32
  }
}

</mosaic_0001>

<llo_original>
// kernel: tpu_custom_call.1
$region0: #{tpu_custom_call.1}
  #allocation0 [shape = 'u32[]', space=smem, size = 0x4, offset = 0x4, fixed_abs, tag = 'smem constant byte address 0x4 - core index']
  #allocation1 [shape = 'u32[72,128]{1,0:T(1,128)}', space=vmem, size = 0x9000, scoped, tag = 'internal scratch']
  %s0 = inlined_call_operand.vmem [shape: f32[8,128], index: 0, kind: input, shape index: {}]
  %s1 = inlined_call_operand.vmem [shape: f32[128,128], index: 1, kind: input, shape index: {}]
  %s2 = inlined_call_operand.vmem [shape: f32[128,192], index: 2, kind: input, shape index: {}]
  %s3 = inlined_call_operand.vmem [shape: f32[1,192], index: 3, kind: input, shape index: {}]
  %s4 = inlined_call_operand.hbm [shape: f32[192,384], index: 4, kind: input, shape index: {}]
  %s5 = inlined_call_operand.vmem [shape: f32[1,384], index: 5, kind: input, shape index: {}]
  %s6 = inlined_call_operand.vmem [shape: f32[32,128], index: 6, kind: input, shape index: {}]
  %s7 = inlined_call_operand.vmem [shape: f32[32,128], index: 7, kind: input, shape index: {}]
  %s8 = inlined_call_operand.vmem [shape: f32[1,128], index: 8, kind: input, shape index: {}]
  %s9 = inlined_call_operand.hbm [shape: f32[8,128], index: 9, kind: output, shape index: {}]
  %s10 = sld [smem:[#allocation0]]
  $region50: #{tpu_custom_call.1} parent=0
    _
  %s12 = ssub.s32 1, %s10
  %s13 = scalar_select 0, %s12, %s10
  $region1: #{tpu_custom_call.1} parent=0
    #allocation2 [shape = 'u8[294912]{0}', space=vmem, size = 0x48000, scoped, tag = 'input window, operand 4, single buffered']
    #allocation3 [shape = 's32[1]{0}', space=sflag, size = 0x4, scoped, tag = 'scoped memory for tpu_custom_call.1']
    #allocation4 [shape = 's32[1]{0}', space=sflag, size = 0x4, scoped, tag = 'scoped memory for tpu_custom_call.1']
    #allocation5 [shape = 'u8[4096]{0}', space=vmem, size = 0x1000, scoped, tag = 'output window, operand 0, single buffered']
    %14 = vsyncpa [#allocation3], 0
    %15 = vsyncpa [#allocation4], 0
    // Predicated region
    $region2: #{tpu_custom_call.1} parent=1 // pred_check
      _
    $region3: #{tpu_custom_call.1} parent=1 // pred_check_branch
      %17 = sbr.rel (0) target = $region5
    $region4: #{tpu_custom_call.1} parent=1 // pred_region
      _
    $region5: #{tpu_custom_call.1} parent=1 // pred_fallthru
      _
    // Predicated region
    $region6: #{tpu_custom_call.1} parent=1 // pred_check
      _
    $region7: #{tpu_custom_call.1} parent=1 // pred_check_branch
      %19 = sbr.rel (0) target = $region9
    $region8: #{tpu_custom_call.1} parent=1 // pred_region
      _
    $region9: #{tpu_custom_call.1} parent=1 // pred_fallthru
      _
    // Predicated region
    $region10: #{tpu_custom_call.1} parent=1 // pred_check
      _
    $region11: #{tpu_custom_call.1} parent=1 // pred_check_branch
      %21 = sbr.rel (0) target = $region13
    $region12: #{tpu_custom_call.1} parent=1 // pred_region
      _
    $region13: #{tpu_custom_call.1} parent=1 // pred_fallthru
      _
    // Predicated region
    $region14: #{tpu_custom_call.1} parent=1 // pred_check
      _
    $region15: #{tpu_custom_call.1} parent=1 // pred_check_branch
      %23 = sbr.rel (0) target = $region17
    $region16: #{tpu_custom_call.1} parent=1 // pred_region
      _
    $region17: #{tpu_custom_call.1} parent=1 // pred_fallthru
      _
    // Predicated region
    $region18: #{tpu_custom_call.1} parent=1 // pred_check
      _
    $region19: #{tpu_custom_call.1} parent=1 // pred_check_branch
      %25 = sbr.rel (0) target = $region21
    $region20: #{tpu_custom_call.1} parent=1 // pred_region
      %27 = vsyncadd [#allocation3], 0
      %s28 = sshll.u32 %s4, 4
      %s29 = int_to_ptr.hbm [resolvable:$true] %s28
      %s30 = sshll.u32 [#allocation2], 4
      %s31 = int_to_ptr.vmem [resolvable:$true] %s30
      %36 = dma.hbm_to_vmem [thread:$0]  %s29, 9216, %s31, [#allocation3], 384, 384, 24
    $region21: #{tpu_custom_call.1} parent=1 // pred_fallthru
      _
    // Predicated region
    $region22: #{tpu_custom_call.1} parent=1 // pred_check
      _
    $region23: #{tpu_custom_call.1} parent=1 // pred_check_branch
      %38 = sbr.rel (0) target = $region25
    $region24: #{tpu_custom_call.1} parent=1 // pred_region
      _
    $region25: #{tpu_custom_call.1} parent=1 // pred_fallthru
      _
    // Predicated region
    $region26: #{tpu_custom_call.1} parent=1 // pred_check
      _
    $region27: #{tpu_custom_call.1} parent=1 // pred_check_branch
      %40 = sbr.rel (0) target = $region29
    $region28: #{tpu_custom_call.1} parent=1 // pred_region
      _
    $region29: #{tpu_custom_call.1} parent=1 // pred_fallthru
      _
    // Predicated region
    $region30: #{tpu_custom_call.1} parent=1 // pred_check
      _
    $region31: #{tpu_custom_call.1} parent=1 // pred_check_branch
      %42 = sbr.rel (0) target = $region33
    $region32: #{tpu_custom_call.1} parent=1 // pred_region
      _
    $region33: #{tpu_custom_call.1} parent=1 // pred_fallthru
      _
    // Predicated region
    $region34: #{tpu_custom_call.1} parent=1 // pred_check
      _
    $region35: #{tpu_custom_call.1} parent=1 // pred_check_branch
      %44 = sbr.rel (0) target = $region37
    $region36: #{tpu_custom_call.1} parent=1 // pred_region
      _
    $region37: #{tpu_custom_call.1} parent=1 // pred_fallthru
      _
    // Predicated region
    $region38: #{tpu_custom_call.1} parent=1 // pred_check
      _
    $region39: #{tpu_custom_call.1} parent=1 // pred_check_branch
      %46 = sbr.rel (0) target = $region41
    $region40: #{tpu_custom_call.1} parent=1 // pred_region
      %48 = dma.done [#allocation3], 9216
    $region41: #{tpu_custom_call.1} parent=1 // pred_fallthru
      _
    %v49 = vld [vmem:[%s0] sm:$0xff]
    %v50 = vmul.f32 %v49, %v49
    %v51 = vld [vmem:[%s1] sm:$0xff]
    %v52 = vld [vmem:[%s1 + $0x8] sm:$0xff]
    %v53 = vld [vmem:[%s1 + $0x10] sm:$0xff]
    %v54 = vld [vmem:[%s1 + $0x18] sm:$0xff]
    %v55 = vld [vmem:[%s1 + $0x20] sm:$0xff]
    %v56 = vld [vmem:[%s1 + $0x28] sm:$0xff]
    %v57 = vld [vmem:[%s1 + $0x30] sm:$0xff]
    %v58 = vld [vmem:[%s1 + $0x38] sm:$0xff]
    %v59 = vld [vmem:[%s1 + $0x40] sm:$0xff]
    %v60 = vld [vmem:[%s1 + $0x48] sm:$0xff]
    %v61 = vld [vmem:[%s1 + $0x50] sm:$0xff]
    %v62 = vld [vmem:[%s1 + $0x58] sm:$0xff]
    %v63 = vld [vmem:[%s1 + $0x60] sm:$0xff]
    %v64 = vld [vmem:[%s1 + $0x68] sm:$0xff]
    %v65 = vld [vmem:[%s1 + $0x70] sm:$0xff]
    %v66 = vld [vmem:[%s1 + $0x78] sm:$0xff]
    %67 = vmatpush.msra.mxu0 %v66
    %68 = vmatpush.msra.mxu0 %v65
    %69 = vmatpush.msra.mxu0 %v64
    %70 = vmatpush.msra.mxu0 %v63
    %71 = vmatpush.msra.mxu0 %v62
    %72 = vmatpush.msra.mxu0 %v61
    %73 = vmatpush.msra.mxu0 %v60
    %74 = vmatpush.msra.mxu0 %v59
    %75 = vmatpush.msra.mxu0 %v58
    %76 = vmatpush.msra.mxu0 %v57
    %77 = vmatpush.msra.mxu0 %v56
    %78 = vmatpush.msra.mxu0 %v55
    %79 = vmatpush.msra.mxu0 %v54
    %80 = vmatpush.msra.mxu0 %v53
    %81 = vmatpush.msra.mxu0 %v52
    %82 = vmatpush.msra.mxu0 %v51
    %83 = vmatmul.f32.gmra.mxu0 %v50
    %v84 = vpop.f32.mrf.mxu0
    %v85 = vadd.f32 0.0, %v84
    %86 = vdwg.mxu0
    %v87 = vmax.f32 %v85, 1e-24
    %v88 = vrsqrt.pop %v87
    %v89 = vmul.f32 %v88, %v87
    %v90 = vmul.f32 %v89, %v88
    %v91 = vmul.f32 0.5, %v90
    %v92 = vsub.f32 1.5, %v91
    %v93 = vmul.f32 %v88, %v92
    %vm94 = vweird.f32 %v87
    %vm95 = vweird.f32 %v88
    %vm96 = vmor %vm94, %vm95
    %v97 = vsel %vm96, %v88, %v93
    %v98 = vmul.f32 %v49, %v97
    %v99 = vld [vmem:[%s2] sm:$0xff]
    %v100 = vld [vmem:[%s2 + $0x8] sm:$0xff]
    %v101 = vld [vmem:[%s2 + $0x10] sm:$0xff]
    %v102 = vld [vmem:[%s2 + $0x18] sm:$0xff]
    %v103 = vld [vmem:[%s2 + $0x20] sm:$0xff]
    %v104 = vld [vmem:[%s2 + $0x28] sm:$0xff]
    %v105 = vld [vmem:[%s2 + $0x30] sm:$0xff]
    %v106 = vld [vmem:[%s2 + $0x38] sm:$0xff]
    %v107 = vld [vmem:[%s2 + $0x40] sm:$0xff]
    %v108 = vld [vmem:[%s2 + $0x48] sm:$0xff]
    %v109 = vld [vmem:[%s2 + $0x50] sm:$0xff]
    %v110 = vld [vmem:[%s2 + $0x58] sm:$0xff]
    %v111 = vld [vmem:[%s2 + $0x60] sm:$0xff]
    %v112 = vld [vmem:[%s2 + $0x68] sm:$0xff]
    %v113 = vld [vmem:[%s2 + $0x70] sm:$0xff]
    %v114 = vld [vmem:[%s2 + $0x78] sm:$0xff]
    %v115 = vld [vmem:[%s2 + $0x80] sm:$0xff]
    %v116 = vld [vmem:[%s2 + $0x88] sm:$0xff]
    %v117 = vld [vmem:[%s2 + $0x90] sm:$0xff]
    %v118 = vld [vmem:[%s2 + $0x98] sm:$0xff]
    %v119 = vld [vmem:[%s2 + $0xa0] sm:$0xff]
    %v120 = vld [vmem:[%s2 + $0xa8] sm:$0xff]
    %v121 = vld [vmem:[%s2 + $0xb0] sm:$0xff]
    %v122 = vld [vmem:[%s2 + $0xb8] sm:$0xff]
    %v123 = vld [vmem:[%s2 + $0xc0] sm:$0xff]
    %v124 = vld [vmem:[%s2 + $0xc8] sm:$0xff]
    %v125 = vld [vmem:[%s2 + $0xd0] sm:$0xff]
    %v126 = vld [vmem:[%s2 + $0xd8] sm:$0xff]
    %v127 = vld [vmem:[%s2 + $0xe0] sm:$0xff]
    %v128 = vld [vmem:[%s2 + $0xe8] sm:$0xff]
    %v129 = vld [vmem:[%s2 + $0xf0] sm:$0xff]
    %v130 = vld [vmem:[%s2 + $0xf8] sm:$0xff]
    %v131 = vld [vmem:[%s3] sm:$0x3]
    %v133 = vperm.slane %v131, 0
    %v134 = vperm.slane %v131, 1
    %137 = vmatpush.msra.mxu0 %v129
    %138 = vmatpush.msra.mxu0 %v127
    %139 = vmatpush.msra.mxu0 %v125
    %140 = vmatpush.msra.mxu0 %v123
    %141 = vmatpush.msra.mxu0 %v121
    %142 = vmatpush.msra.mxu0 %v119
    %143 = vmatpush.msra.mxu0 %v117
    %144 = vmatpush.msra.mxu0 %v115
    %145 = vmatpush.msra.mxu0 %v113
    %146 = vmatpush.msra.mxu0 %v111
    %147 = vmatpush.msra.mxu0 %v109
    %148 = vmatpush.msra.mxu0 %v107
    %149 = vmatpush.msra.mxu0 %v105
    %150 = vmatpush.msra.mxu0 %v103
    %151 = vmatpush.msra.mxu0 %v101
    %152 = vmatpush.msra.mxu0 %v99
    %153 = vmatmul.f32.gmra.mxu0 %v98
    %v154 = vpop.f32.mrf.mxu0
    %v155 = vadd.f32 %v133, %v154
    %156 = vdwg.mxu0
    %157 = vmatpush.msra.mxu0 %v130
    %158 = vmatpush.msra.mxu0 %v128
    %159 = vmatpush.msra.mxu0 %v126
    %160 = vmatpush.msra.mxu0 %v124
    %161 = vmatpush.msra.mxu0 %v122
    %162 = vmatpush.msra.mxu0 %v120
    %163 = vmatpush.msra.mxu0 %v118
    %164 = vmatpush.msra.mxu0 %v116
    %165 = vmatpush.msra.mxu0 %v114
    %166 = vmatpush.msra.mxu0 %v112
    %167 = vmatpush.msra.mxu0 %v110
    %168 = vmatpush.msra.mxu0 %v108
    %169 = vmatpush.msra.mxu0 %v106
    %170 = vmatpush.msra.mxu0 %v104
    %171 = vmatpush.msra.mxu0 %v102
    %172 = vmatpush.msra.mxu0 %v100
    %173 = vmatmul.f32.gmra.mxu0 %v98
    %v174 = vpop.f32.mrf.mxu0
    %v175 = vadd.f32 %v134, %v174
    %176 = vdwg.mxu0
    %v177 = vmax.f32 %v155, 0.0
    %v178 = vmax.f32 %v175, 0.0
    %v179 = vld [vmem:[#allocation2] sm:$0xff]
    %v180 = vld [vmem:[#allocation2 + $0x8] sm:$0xff]
    %v181 = vld [vmem:[#allocation2 + $0x10] sm:$0xff]
    %v182 = vld [vmem:[#allocation2 + $0x18] sm:$0xff]
    %v183 = vld [vmem:[#allocation2 + $0x20] sm:$0xff]
    %v184 = vld [vmem:[#allocation2 + $0x28] sm:$0xff]
    %v185 = vld [vmem:[#allocation2 + $0x30] sm:$0xff]
    %v186 = vld [vmem:[#allocation2 + $0x38] sm:$0xff]
    %v187 = vld [vmem:[#allocation2 + $0x40] sm:$0xff]
    %v188 = vld [vmem:[#allocation2 + $0x48] sm:$0xff]
    %v189 = vld [vmem:[#allocation2 + $0x50] sm:$0xff]
    %v190 = vld [vmem:[#allocation2 + $0x58] sm:$0xff]
    %v191 = vld [vmem:[#allocation2 + $0x60] sm:$0xff]
    %v192 = vld [vmem:[#allocation2 + $0x68] sm:$0xff]
    %v193 = vld [vmem:[#allocation2 + $0x70] sm:$0xff]
    %v194 = vld [vmem:[#allocation2 + $0x78] sm:$0xff]
    %v195 = vld [vmem:[#allocation2 + $0x80] sm:$0xff]
    %v196 = vld [vmem:[#allocation2 + $0x88] sm:$0xff]
    %v197 = vld [vmem:[#allocation2 + $0x90] sm:$0xff]
    %v198 = vld [vmem:[#allocation2 + $0x98] sm:$0xff]
    %v199 = vld [vmem:[#allocation2 + $0xa0] sm:$0xff]
    %v200 = vld [vmem:[#allocation2 + $0xa8] sm:$0xff]
    %v201 = vld [vmem:[#allocation2 + $0xb0] sm:$0xff]
    %v202 = vld [vmem:[#allocation2 + $0xb8] sm:$0xff]
    %v203 = vld [vmem:[#allocation2 + $0xc0] sm:$0xff]
    %v204 = vld [vmem:[#allocation2 + $0xc8] sm:$0xff]
    %v205 = vld [vmem:[#allocation2 + $0xd0] sm:$0xff]
    %v206 = vld [vmem:[#allocation2 + $0xd8] sm:$0xff]
    %v207 = vld [vmem:[#allocation2 + $0xe0] sm:$0xff]
    %v208 = vld [vmem:[#allocation2 + $0xe8] sm:$0xff]
    %v209 = vld [vmem:[#allocation2 + $0xf0] sm:$0xff]
    %v210 = vld [vmem:[#allocation2 + $0xf8] sm:$0xff]
    %v211 = vld [vmem:[#allocation2 + $0x100] sm:$0xff]
    %v212 = vld [vmem:[#allocation2 + $0x108] sm:$0xff]
    %v213 = vld [vmem:[#allocation2 + $0x110] sm:$0xff]
    %v214 = vld [vmem:[#allocation2 + $0x118] sm:$0xff]
    %v215 = vld [vmem:[#allocation2 + $0x120] sm:$0xff]
    %v216 = vld [vmem:[#allocation2 + $0x128] sm:$0xff]
    %v217 = vld [vmem:[#allocation2 + $0x130] sm:$0xff]
    %v218 = vld [vmem:[#allocation2 + $0x138] sm:$0xff]
    %v219 = vld [vmem:[#allocation2 + $0x140] sm:$0xff]
    %v220 = vld [vmem:[#allocation2 + $0x148] sm:$0xff]
    %v221 = vld [vmem:[#allocation2 + $0x150] sm:$0xff]
    %v222 = vld [vmem:[#allocation2 + $0x158] sm:$0xff]
    %v223 = vld [vmem:[#allocation2 + $0x160] sm:$0xff]
    %v224 = vld [vmem:[#allocation2 + $0x168] sm:$0xff]
    %v225 = vld [vmem:[#allocation2 + $0x170] sm:$0xff]
    %v226 = vld [vmem:[#allocation2 + $0x178] sm:$0xff]
    %v227 = vld [vmem:[#allocation2 + $0x180] sm:$0xff]
    %v228 = vld [vmem:[#allocation2 + $0x188] sm:$0xff]
    %v229 = vld [vmem:[#allocation2 + $0x190] sm:$0xff]
    %v230 = vld [vmem:[#allocation2 + $0x198] sm:$0xff]
    %v231 = vld [vmem:[#allocation2 + $0x1a0] sm:$0xff]
    %v232 = vld [vmem:[#allocation2 + $0x1a8] sm:$0xff]
    %v233 = vld [vmem:[#allocation2 + $0x1b0] sm:$0xff]
    %v234 = vld [vmem:[#allocation2 + $0x1b8] sm:$0xff]
    %v235 = vld [vmem:[#allocation2 + $0x1c0] sm:$0xff]
    %v236 = vld [vmem:[#allocation2 + $0x1c8] sm:$0xff]
    %v237 = vld [vmem:[#allocation2 + $0x1d0] sm:$0xff]
    %v238 = vld [vmem:[#allocation2 + $0x1d8] sm:$0xff]
    %v239 = vld [vmem:[#allocation2 + $0x1e0] sm:$0xff]
    %v240 = vld [vmem:[#allocation2 + $0x1e8] sm:$0xff]
    %v241 = vld [vmem:[#allocation2 + $0x1f0] sm:$0xff]
    %v242 = vld [vmem:[#allocation2 + $0x1f8] sm:$0xff]
    %v243 = vld [vmem:[#allocation2 + $0x200] sm:$0xff]
    %v244 = vld [vmem:[#allocation2 + $0x208] sm:$0xff]
    %v245 = vld [vmem:[#allocation2 + $0x210] sm:$0xff]
    %v246 = vld [vmem:[#allocation2 + $0x218] sm:$0xff]
    %v247 = vld [vmem:[#allocation2 + $0x220] sm:$0xff]
    %v248 = vld [vmem:[#allocation2 + $0x228] sm:$0xff]
    %v249 = vld [vmem:[#allocation2 + $0x230] sm:$0xff]
    %v250 = vld [vmem:[#allocation2 + $0x238] sm:$0xff]
    %v251 = vld [vmem:[%s5] sm:$0x7]
    %v253 = vperm.slane %v251, 0
    %v254 = vperm.slane %v251, 1
    %v255 = vperm.slane %v251, 2
    %vm259 = vcmask 523264
    %v261 = vsel %vm259, %v178, 0
    %263 = vmatpush.msra.mxu0 %v224
    %264 = vmatpush.msra.mxu0 %v221
    %265 = vmatpush.msra.mxu0 %v218
    %266 = vmatpush.msra.mxu0 %v215
    %267 = vmatpush.msra.mxu0 %v212
    %268 = vmatpush.msra.mxu0 %v209
    %269 = vmatpush.msra.mxu0 %v206
    %270 = vmatpush.msra.mxu0 %v203
    %271 = vmatpush.msra.mxu0 %v200
    %272 = vmatpush.msra.mxu0 %v197
    %273 = vmatpush.msra.mxu0 %v194
    %274 = vmatpush.msra.mxu0 %v191
    %275 = vmatpush.msra.mxu0 %v188
    %276 = vmatpush.msra.mxu0 %v185
    %277 = vmatpush.msra.mxu0 %v182
    %278 = vmatpush.msra.mxu0 %v179
    %279 = vmatmul.f32.gmra.mxu0 %v177
    %v280 = vpop.f32.mrf.mxu0
    %v281 = vadd.f32 %v253, %v280
    %282 = vdwg.mxu0
    %283 = vmatpush.msra.mxu0 0.0
    %284 = vmatpush.msra.mxu0 0.0
    %285 = vmatpush.msra.mxu0 0.0
    %286 = vmatpush.msra.mxu0 0.0
    %287 = vmatpush.msra.mxu0 0.0
    %288 = vmatpush.msra.mxu0 0.0
    %289 = vmatpush.msra.mxu0 0.0
    %290 = vmatpush.msra.mxu0 0.0
    %291 = vmatpush.msra.mxu0 %v248
    %292 = vmatpush.msra.mxu0 %v245
    %293 = vmatpush.msra.mxu0 %v242
    %294 = vmatpush.msra.mxu0 %v239
    %295 = vmatpush.msra.mxu0 %v236
    %296 = vmatpush.msra.mxu0 %v233
    %297 = vmatpush.msra.mxu0 %v230
    %298 = vmatpush.msra.mxu0 %v227
    %299 = vmatmul.f32.gmra.mxu0 %v261
    %v300 = vpop.f32.mrf.mxu0
    %v301 = vadd.f32 %v281, %v300
    %302 = vdwg.mxu0
    %303 = vmatpush.msra.mxu0 %v225
    %304 = vmatpush.msra.mxu0 %v222
    %305 = vmatpush.msra.mxu0 %v219
    %306 = vmatpush.msra.mxu0 %v216
    %307 = vmatpush.msra.mxu0 %v213
    %308 = vmatpush.msra.mxu0 %v210
    %309 = vmatpush.msra.mxu0 %v207
    %310 = vmatpush.msra.mxu0 %v204
    %311 = vmatpush.msra.mxu0 %v201
    %312 = vmatpush.msra.mxu0 %v198
    %313 = vmatpush.msra.mxu0 %v195
    %314 = vmatpush.msra.mxu0 %v192
    %315 = vmatpush.msra.mxu0 %v189
    %316 = vmatpush.msra.mxu0 %v186
    %317 = vmatpush.msra.mxu0 %v183
    %318 = vmatpush.msra.mxu0 %v180
    %319 = vmatmul.f32.gmra.mxu0 %v177
    %v320 = vpop.f32.mrf.mxu0
    %v321 = vadd.f32 %v254, %v320
    %322 = vdwg.mxu0
    %323 = vmatpush.msra.mxu0 0.0
    %324 = vmatpush.msra.mxu0 0.0
    %325 = vmatpush.msra.mxu0 0.0
    %326 = vmatpush.msra.mxu0 0.0
    %327 = vmatpush.msra.mxu0 0.0
    %328 = vmatpush.msra.mxu0 0.0
    %329 = vmatpush.msra.mxu0 0.0
    %330 = vmatpush.msra.mxu0 0.0
    %331 = vmatpush.msra.mxu0 %v249
    %332 = vmatpush.msra.mxu0 %v246
    %333 = vmatpush.msra.mxu0 %v243
    %334 = vmatpush.msra.mxu0 %v240
    %335 = vmatpush.msra.mxu0 %v237
    %336 = vmatpush.msra.mxu0 %v234
    %337 = vmatpush.msra.mxu0 %v231
    %338 = vmatpush.msra.mxu0 %v228
    %339 = vmatmul.f32.gmra.mxu0 %v261
    %v340 = vpop.f32.mrf.mxu0
    %v341 = vadd.f32 %v321, %v340
    %342 = vdwg.mxu0
    %343 = vmatpush.msra.mxu0 %v226
    %344 = vmatpush.msra.mxu0 %v223
    %345 = vmatpush.msra.mxu0 %v220
    %346 = vmatpush.msra.mxu0 %v217
    %347 = vmatpush.msra.mxu0 %v214
    %348 = vmatpush.msra.mxu0 %v211
    %349 = vmatpush.msra.mxu0 %v208
    %350 = vmatpush.msra.mxu0 %v205
    %351 = vmatpush.msra.mxu0 %v202
    %352 = vmatpush.msra.mxu0 %v199
    %353 = vmatpush.msra.mxu0 %v196
    %354 = vmatpush.msra.mxu0 %v193
    %355 = vmatpush.msra.mxu0 %v190
    %356 = vmatpush.msra.mxu0 %v187
    %357 = vmatpush.msra.mxu0 %v184
    %358 = vmatpush.msra.mxu0 %v181
    %359 = vmatmul.f32.gmra.mxu0 %v177
    %v360 = vpop.f32.mrf.mxu0
    %v361 = vadd.f32 %v255, %v360
    %362 = vdwg.mxu0
    %363 = vmatpush.msra.mxu0 0.0
    %364 = vmatpush.msra.mxu0 0.0
    %365 = vmatpush.msra.mxu0 0.0
    %366 = vmatpush.msra.mxu0 0.0
    %367 = vmatpush.msra.mxu0 0.0
    %368 = vmatpush.msra.mxu0 0.0
    %369 = vmatpush.msra.mxu0 0.0
    %370 = vmatpush.msra.mxu0 0.0
    %371 = vmatpush.msra.mxu0 %v250
    %372 = vmatpush.msra.mxu0 %v247
    %373 = vmatpush.msra.mxu0 %v244
    %374 = vmatpush.msra.mxu0 %v241
    %375 = vmatpush.msra.mxu0 %v238
    %376 = vmatpush.msra.mxu0 %v235
    %377 = vmatpush.msra.mxu0 %v232
    %378 = vmatpush.msra.mxu0 %v229
    %379 = vmatmul.f32.gmra.mxu0 %v261
    %v380 = vpop.f32.mrf.mxu0
    %v381 = vadd.f32 %v361, %v380
    %382 = vdwg.mxu0
    %v383 = vld [vmem:[%s6] sm:$0xff]
    %v384 = vld [vmem:[%s6 + $0x8] sm:$0xff]
    %v385 = vld [vmem:[%s6 + $0x10] sm:$0xff]
    %v386 = vld [vmem:[%s6 + $0x18] sm:$0xff]
    %vm387 = vcmask 261120
    %v389 = vsel %vm387, 0.0, 0
    %391 = vmatpush.msra.mxu0 0.0
    %392 = vmatpush.msra.mxu0 0.0
    %393 = vmatpush.msra.mxu0 0.0
    %394 = vmatpush.msra.mxu0 0.0
    %395 = vmatpush.msra.mxu0 0.0
    %396 = vmatpush.msra.mxu0 0.0
    %397 = vmatpush.msra.mxu0 0.0
    %398 = vmatpush.msra.mxu0 0.0
    %399 = vmatpush.msra.mxu0 0.0
    %400 = vmatpush.msra.mxu0 0.0
    %401 = vmatpush.msra.mxu0 0.0
    %402 = vmatpush.msra.mxu0 0.0
    %403 = vmatpush.msra.mxu0 %v386
    %404 = vmatpush.msra.mxu0 %v385
    %405 = vmatpush.msra.mxu0 %v384
    %406 = vmatpush.msra.mxu0 %v383
    %407 = vmatmul.f32.gmra.mxu0 %v389
    %v408 = vpop.f32.mrf.mxu0
    %v409 = vadd.f32 0.0, %v408
    %410 = vdwg.mxu0
    %v411 = vadd.f32 %v301, %v409
    %v412 = vxor.u32 %v411, 2147483648
    %v413 = vmul.f32 %v412, 1.442695
    %v414 = vpow.pop %v413
    %v415 = vadd.f32 %v414, 1.0
    %v416 = vrcp.pop %v415
    %v417 = vmul.f32 %v415, %v416
    %v418 = vsub.f32 1.0, %v417
    %v419 = vmul.f32 %v416, %v418
    %v420 = vadd.f32 %v416, %v419
    %vm421 = vweird.f32 %v415
    %vm422 = vweird.f32 %v416
    %vm423 = vmor %vm421, %vm422
    %v424 = vsel %vm423, %v416, %v420
    %v425 = vand.u32 2147483647, %v415
    %vm426 = vcmp.eq.f32.partialorder %v425, 8.507059e+37
    %v427 = vand.u32 %v415, 2147483648
    %v428 = vor.u32 1.1754944e-38, %v427
    %v429 = vsel %vm426, %v428, %v424
    %v430 = vmul.f32 1.0, %v429
    %v431 = vtanh.pop %v411
    %v432 = vmul.f32 %v430, 0.0
    %434 = vrot.lane.b32.xlu0 %v431, 64
    %v435 = vpop.permute.xlu0 %434
    %v437 = vmul.f32 %v430, %v435
    %439 = vrot.lane.b32.xlu0 %v437, 32
    %v440 = vpop.permute.xlu0 %439
    %v442 = vadd.f32 %v432, %v440
    %v443 = vtanh.pop %v442
    %445 = vrot.lane.b32.xlu0 %v443, 64
    %v446 = vpop.permute.xlu0 %445
    %v448 = vmul.f32 %v430, %v446
    %450 = vrot.lane.b32.xlu0 %v448, 32
    %v451 = vpop.permute.xlu0 %450
    %v452 = vsel %vm387, %v451, 0
    %454 = vmatpush.msra.mxu0 0.0
    %455 = vmatpush.msra.mxu0 0.0
    %456 = vmatpush.msra.mxu0 0.0
    %457 = vmatpush.msra.mxu0 0.0
    %458 = vmatpush.msra.mxu0 0.0
    %459 = vmatpush.msra.mxu0 0.0
    %460 = vmatpush.msra.mxu0 0.0
    %461 = vmatpush.msra.mxu0 0.0
    %462 = vmatpush.msra.mxu0 0.0
    %463 = vmatpush.msra.mxu0 0.0
    %464 = vmatpush.msra.mxu0 0.0
    %465 = vmatpush.msra.mxu0 0.0
    %466 = vmatpush.msra.mxu0 %v386
    %467 = vmatpush.msra.mxu0 %v385
    %468 = vmatpush.msra.mxu0 %v384
    %469 = vmatpush.msra.mxu0 %v383
    %470 = vmatmul.f32.gmra.mxu0 %v452
    %v471 = vpop.f32.mrf.mxu0
    %v472 = vadd.f32 0.0, %v471
    %473 = vdwg.mxu0
    %v474 = vadd.f32 %v341, %v472
    %v475 = vxor.u32 %v474, 2147483648
    %v476 = vmul.f32 %v475, 1.442695
    %v477 = vpow.pop %v476
    %v478 = vadd.f32 %v477, 1.0
    %v479 = vrcp.pop %v478
    %v480 = vmul.f32 %v478, %v479
    %v481 = vsub.f32 1.0, %v480
    %v482 = vmul.f32 %v479, %v481
    %v483 = vadd.f32 %v479, %v482
    %vm484 = vweird.f32 %v478
    %vm485 = vweird.f32 %v479
    %vm486 = vmor %vm484, %vm485
    %v487 = vsel %vm486, %v479, %v483
    %v488 = vand.u32 2147483647, %v478
    %vm489 = vcmp.eq.f32.partialorder %v488, 8.507059e+37
    %v490 = vand.u32 %v478, 2147483648
    %v491 = vor.u32 1.1754944e-38, %v490
    %v492 = vsel %vm489, %v491, %v487
    %v493 = vmul.f32 1.0, %v492
    %v494 = vtanh.pop %v474
    %v495 = vmul.f32 %v493, %v442
    %497 = vrot.lane.b32.xlu0 %v494, 64
    %v498 = vpop.permute.xlu0 %497
    %v500 = vmul.f32 %v493, %v498
    %502 = vrot.lane.b32.xlu0 %v500, 32
    %v503 = vpop.permute.xlu0 %502
    %v505 = vadd.f32 %v495, %v503
    %v506 = vtanh.pop %v505
    %508 = vrot.lane.b32.xlu0 %v506, 64
    %v509 = vpop.permute.xlu0 %508
    %v511 = vmul.f32 %v493, %v509
    %513 = vrot.lane.b32.xlu0 %v511, 32
    %v514 = vpop.permute.xlu0 %513
    %v515 = vsel %vm387, %v514, 0
    %517 = vmatpush.msra.mxu0 0.0
    %518 = vmatpush.msra.mxu0 0.0
    %519 = vmatpush.msra.mxu0 0.0
    %520 = vmatpush.msra.mxu0 0.0
    %521 = vmatpush.msra.mxu0 0.0
    %522 = vmatpush.msra.mxu0 0.0
    %523 = vmatpush.msra.mxu0 0.0
    %524 = vmatpush.msra.mxu0 0.0
    %525 = vmatpush.msra.mxu0 0.0
    %526 = vmatpush.msra.mxu0 0.0
    %527 = vmatpush.msra.mxu0 0.0
    %528 = vmatpush.msra.mxu0 0.0
    %529 = vmatpush.msra.mxu0 %v386
    %530 = vmatpush.msra.mxu0 %v385
    %531 = vmatpush.msra.mxu0 %v384
    %532 = vmatpush.msra.mxu0 %v383
    %533 = vmatmul.f32.gmra.mxu0 %v515
    %v534 = vpop.f32.mrf.mxu0
    %v535 = vadd.f32 0.0, %v534
    %536 = vdwg.mxu0
    %v537 = vadd.f32 %v381, %v535
    %v538 = vxor.u32 %v537, 2147483648
    %v539 = vmul.f32 %v538, 1.442695
    %v540 = vpow.pop %v539
    %v541 = vadd.f32 %v540, 1.0
    %v542 = vrcp.pop %v541
    %v543 = vmul.f32 %v541, %v542
    %v544 = vsub.f32 1.0, %v543
    %v545 = vmul.f32 %v542, %v544
    %v546 = vadd.f32 %v542, %v545
    %vm547 = vweird.f32 %v541
    %vm548 = vweird.f32 %v542
    %vm549 = vmor %vm547, %vm548
    %v550 = vsel %vm549, %v542, %v546
    %v551 = vand.u32 2147483647, %v541
    %vm552 = vcmp.eq.f32.partialorder %v551, 8.507059e+37
    %v553 = vand.u32 %v541, 2147483648
    %v554 = vor.u32 1.1754944e-38, %v553
    %v555 = vsel %vm552, %v554, %v550
    %v556 = vmul.f32 1.0, %v555
    %v557 = vtanh.pop %v537
    %v558 = vmul.f32 %v556, %v505
    %560 = vrot.lane.b32.xlu0 %v557, 64
    %v561 = vpop.permute.xlu0 %560
    %v563 = vmul.f32 %v556, %v561
    %565 = vrot.lane.b32.xlu0 %v563, 32
    %v566 = vpop.permute.xlu0 %565
    %v568 = vadd.f32 %v558, %v566
    %v569 = vtanh.pop %v568
    %571 = vrot.lane.b32.xlu0 %v569, 64
    %v572 = vpop.permute.xlu0 %571
    %v574 = vmul.f32 %v556, %v572
    %v575 = vld [vmem:[%s7] sm:$0xff]
    %v576 = vld [vmem:[%s7 + $0x8] sm:$0xff]
    %v577 = vld [vmem:[%s7 + $0x10] sm:$0xff]
    %v578 = vld [vmem:[%s7 + $0x18] sm:$0xff]
    %v579 = vld [vmem:[%s8] sm:$0x1]
    %v581 = vperm.slane %v579, 0
    %584 = vrot.lane.b32.xlu0 %v574, 32
    %v585 = vpop.permute.xlu0 %584
    %v586 = vsel %vm387, %v585, 0
    %588 = vmatpush.msra.mxu0 0.0
    %589 = vmatpush.msra.mxu0 0.0
    %590 = vmatpush.msra.mxu0 0.0
    %591 = vmatpush.msra.mxu0 0.0
    %592 = vmatpush.msra.mxu0 0.0
    %593 = vmatpush.msra.mxu0 0.0
    %594 = vmatpush.msra.mxu0 0.0
    %595 = vmatpush.msra.mxu0 0.0
    %596 = vmatpush.msra.mxu0 0.0
    %597 = vmatpush.msra.mxu0 0.0
    %598 = vmatpush.msra.mxu0 0.0
    %599 = vmatpush.msra.mxu0 0.0
    %600 = vmatpush.msra.mxu0 %v578
    %601 = vmatpush.msra.mxu0 %v577
    %602 = vmatpush.msra.mxu0 %v576
    %603 = vmatpush.msra.mxu0 %v575
    %604 = vmatmul.f32.gmra.mxu0 %v586
    %v605 = vpop.f32.mrf.mxu0
    %v606 = vadd.f32 %v581, %v605
    %607 = vdwg.mxu0
    %608 = vst [vmem:[#allocation5] sm:$0xff] %v606
    // Predicated region
    $region42: #{tpu_custom_call.1} parent=1 // pred_check
      _
    $region43: #{tpu_custom_call.1} parent=1 // pred_check_branch
      %610 = sbr.rel (0) target = $region45
    $region44: #{tpu_custom_call.1} parent=1 // pred_region
      %612 = vsyncadd [#allocation4], 0
      %s614 = sshll.u32 [#allocation5], 4
      %s615 = int_to_ptr.vmem [resolvable:$true] %s614
      %s616 = sshll.u32 %s9, 4
      %s617 = int_to_ptr.hbm [resolvable:$true] %s616
      %619 = dma.vmem_to_hbm [thread:$0]  %s615, 128, %s617, [#allocation4]
    $region45: #{tpu_custom_call.1} parent=1 // pred_fallthru
      _
    // Predicated region
    $region46: #{tpu_custom_call.1} parent=1 // pred_check
      _
    $region47: #{tpu_custom_call.1} parent=1 // pred_check_branch
      %621 = sbr.rel (0) target = $region49
    $region48: #{tpu_custom_call.1} parent=1 // pred_region
      %623 = dma.done [#allocation4], 128
    $region49: #{tpu_custom_call.1} parent=1 // pred_fallthru
      _
    %624 = vsyncpa [#allocation3], 1
    %625 = vsyncpa [#allocation4], 1

</llo_original>
